<compile_context>
chip_gen: v6e
topology: v6e:2x2x1
jax: 0.10.0
libtpu: 0.0.40
codegen_flags: <defaults>
</compile_context>

<pallas_src>
import functools

import jax
import jax.numpy as jnp
from jax.experimental import pallas as pl
from jax.experimental.pallas import tpu as pltpu


def _round_up(x, m):
    return (x + m - 1) // m * m


# ------------------------- Pallas kernels -------------------------

def _conv_tap_kernel(x_ref, w_ref, shift_ref, o_ref, acc_ref, *, relu):
    # One (tm, K) @ (K, tn) bf16 MXU partial product per tap step, accumulated
    # in an f32 VMEM scratch.  BN scale is pre-folded into the weights, so the
    # epilogue is shift-add (+ ReLU) only.
    t = pl.program_id(2)

    @pl.when(t == 0)
    def _():
        acc_ref[...] = jnp.zeros_like(acc_ref)

    acc_ref[...] += jnp.dot(x_ref[0], w_ref[0],
                            preferred_element_type=jnp.float32)

    @pl.when(t == pl.num_programs(2) - 1)
    def _():
        y = acc_ref[...] + shift_ref[...]
        if relu:
            y = jnp.maximum(y, 0.0)
        o_ref[...] = y.astype(o_ref.dtype)


def _conv_tap_res_kernel(x_ref, w_ref, shift_ref, res_ref, o_ref, acc_ref):
    # BasicBlock tail: conv + BN(shift) + residual add + ReLU, fully fused.
    t = pl.program_id(2)

    @pl.when(t == 0)
    def _():
        acc_ref[...] = jnp.zeros_like(acc_ref)

    acc_ref[...] += jnp.dot(x_ref[0], w_ref[0],
                            preferred_element_type=jnp.float32)

    @pl.when(t == pl.num_programs(2) - 1)
    def _():
        y = acc_ref[...] + shift_ref[...] + res_ref[...].astype(jnp.float32)
        o_ref[...] = jnp.maximum(y, 0.0).astype(o_ref.dtype)


def _max_taps_kernel(t_ref, o_ref):
    # max over the 9 shifted taps of a 3x3 max-pool window (pure VPU).
    acc = t_ref[0]
    for i in range(1, t_ref.shape[0]):
        acc = jnp.maximum(acc, t_ref[i])
    o_ref[...] = acc


# ------------------------- Pallas wrappers -------------------------

def _tap_matmul(taps, w_taps, shift, *, relu, residual=None):
    """y[m, c] = sum_t taps[t, m, :] @ w_taps[t, :, c] + shift (+res) (+ReLU).

    taps:  (T, M, K) activations, w_taps: (T, K, C) BN-scale-folded weights.
    Grid = (M tiles 'parallel', C tiles 'parallel', T 'arbitrary' reduction).
    """
    T, M, K = taps.shape
    C = w_taps.shape[2]

    if M >= 256:
        tm = 256            # matches the 2x256^2 MXU on v6e/v7x
    elif M >= 128:
        tm = 128
    else:
        tm = _round_up(M, 8)
    Mp = _round_up(M, tm)
    tn = C if C <= 256 else 256   # C in {64,128,256,512} -> always divides

    xp = jnp.pad(taps, ((0, 0), (0, Mp - M), (0, 0))).astype(jnp.bfloat16)
    wp = w_taps.astype(jnp.bfloat16)
    shift2 = shift.reshape(1, C).astype(jnp.float32)

    in_specs = [
        pl.BlockSpec((1, tm, K), lambda m, c, t: (t, m, 0)),
        pl.BlockSpec((1, K, tn), lambda m, c, t: (t, 0, c)),
        pl.BlockSpec((1, tn), lambda m, c, t: (0, c)),
    ]
    args = [xp, wp, shift2]
    if residual is None:
        kernel = functools.partial(_conv_tap_kernel, relu=relu)
    else:
        # NOTE: the residual kernel always applies ReLU (ResNet BasicBlock).
        assert relu, "residual path always applies ReLU"
        rp = jnp.pad(residual, ((0, Mp - M), (0, 0))).astype(jnp.bfloat16)
        in_specs.append(pl.BlockSpec((tm, tn), lambda m, c, t: (m, c)))
        args.append(rp)
        kernel = _conv_tap_res_kernel

    out = pl.pallas_call(
        kernel,
        out_shape=jax.ShapeDtypeStruct((Mp, C), jnp.bfloat16),
        grid=(Mp // tm, C // tn, T),
        in_specs=in_specs,
        out_specs=pl.BlockSpec((tm, tn), lambda m, c, t: (m, c)),
        scratch_shapes=[pltpu.VMEM((tm, tn), jnp.float32)],
        compiler_params=pltpu.CompilerParams(
            dimension_semantics=("parallel", "parallel", "arbitrary")),
    )(*args)
    return out[:M]


def _extract_patches(x_nhwc, kh, kw, stride, pad, pad_value=0.0):
    """Return stacked taps (kh*kw, N, Ho, Wo, C) — slice/stack glue only
    (no transpose; the tap axis stays major and becomes the reduction grid)."""
    x = jnp.pad(x_nhwc, ((0, 0), (pad, pad), (pad, pad), (0, 0)),
                constant_values=pad_value)
    N, H, W, C = x.shape
    Ho = (H - kh) // stride + 1
    Wo = (W - kw) // stride + 1
    taps = []
    for i in range(kh):
        for j in range(kw):
            taps.append(x[:, i:i + stride * Ho:stride,
                          j:j + stride * Wo:stride, :])
    return jnp.stack(taps, axis=0), (N, Ho, Wo, C)


def conv_bn(x_nhwc, w_oihw, scale, shift, *, stride, pad, relu,
            residual_nhwc=None):
    """Conv2d (bias=False) + BatchNorm (inference) [+ residual] [+ ReLU]."""
    cout, cin, kh, kw = w_oihw.shape
    taps, (N, Ho, Wo, _) = _extract_patches(x_nhwc, kh, kw, stride, pad)
    T = kh * kw
    M = N * Ho * Wo

    # PyTorch (Cout,Cin,KH,KW) -> (KH*KW, Cin, Cout); fold BN scale into weights.
    w_t = jnp.transpose(w_oihw, (2, 3, 1, 0)).reshape(T, cin, cout)
    w_t = w_t * scale.reshape(1, 1, cout)

    if cin < 64:
        # Stem (7x7, Cin=3): flatten taps into a single lane-padded K tile
        # (147 -> 256) rather than 49 tiny K=3 reduction steps.
        K = T * cin
        Kp = _round_up(K, 128)
        pm = jnp.transpose(taps, (1, 2, 3, 0, 4)).reshape(M, K)
        pm = jnp.pad(pm, ((0, 0), (0, Kp - K)))
        wm = jnp.pad(w_t.reshape(K, cout), ((0, Kp - K), (0, 0)))
        x_t = pm.reshape(1, M, Kp)
        w_t = wm.reshape(1, Kp, cout)
    else:
        x_t = taps.reshape(T, M, cin)

    res = None
    if residual_nhwc is not None:
        res = residual_nhwc.reshape(M, cout)
    y = _tap_matmul(x_t, w_t, shift, relu=relu, residual=res)
    return y.reshape(N, Ho, Wo, cout)


def maxpool_3x3_s2_p1(x_nhwc):
    taps, (N, Ho, Wo, C) = _extract_patches(
        x_nhwc, 3, 3, 2, 1, pad_value=-jnp.inf)
    T = taps.shape[0]
    M = N * Ho * Wo
    taps = taps.reshape(T, M, C)
    tm = 128 if M >= 128 else _round_up(M, 8)
    Mp = _round_up(M, tm)
    tp = jnp.pad(taps, ((0, 0), (0, Mp - M), (0, 0)),
                 constant_values=-jnp.inf)
    out = pl.pallas_call(
        _max_taps_kernel,
        out_shape=jax.ShapeDtypeStruct((Mp, C), x_nhwc.dtype),
        grid=(Mp // tm,),
        in_specs=[pl.BlockSpec((T, tm, C), lambda i: (0, i, 0))],
        out_specs=pl.BlockSpec((tm, C), lambda i: (i, 0)),
        compiler_params=pltpu.CompilerParams(
            dimension_semantics=("parallel",)),
    )(tp)
    return out[:M].reshape(N, Ho, Wo, C)


# ------------------------- ResNet18 parameters -------------------------

def _conv_params(key, cout, cin, kh, kw):
    std = (2.0 / (cin * kh * kw)) ** 0.5
    return jax.random.normal(key, (cout, cin, kh, kw), jnp.float32) * std


def _bn_params(key, c, eps=1e-5):
    k1, k2 = jax.random.split(key)
    gamma = 1.0 + 0.1 * jax.random.normal(k1, (c,), jnp.float32)
    beta = 0.1 * jax.random.normal(k2, (c,), jnp.float32)
    running_mean = jnp.zeros((c,), jnp.float32)
    running_var = jnp.ones((c,), jnp.float32)
    scale = gamma / jnp.sqrt(running_var + eps)
    shift = beta - running_mean * scale
    return scale, shift


def init_resnet18_params(key, num_classes=5):
    keys = jax.random.split(key, 64)
    ki = iter(keys)
    p = {}
    p["conv1"] = _conv_params(next(ki), 64, 3, 7, 7)
    p["bn1"] = _bn_params(next(ki), 64)
    layer_cfg = [(64, 64, 1), (64, 128, 2), (128, 256, 2), (256, 512, 2)]
    layers = []
    for cin, cout, stride in layer_cfg:
        blocks = []
        for b in range(2):
            s = stride if b == 0 else 1
            in_c = cin if b == 0 else cout
            blk = {
                "stride": s,
                "conv1": _conv_params(next(ki), cout, in_c, 3, 3),
                "bn1": _bn_params(next(ki), cout),
                "conv2": _conv_params(next(ki), cout, cout, 3, 3),
                "bn2": _bn_params(next(ki), cout),
                "down_w": None,
                "down_bn": None,
            }
            if s != 1 or in_c != cout:
                blk["down_w"] = _conv_params(next(ki), cout, in_c, 1, 1)
                blk["down_bn"] = _bn_params(next(ki), cout)
            blocks.append(blk)
        layers.append(blocks)
    p["layers"] = layers
    fk1, fk2 = jax.random.split(next(ki))
    bound = 1.0 / (512.0 ** 0.5)
    p["fc_w"] = jax.random.uniform(fk1, (num_classes, 512), jnp.float32, -bound, bound)
    p["fc_b"] = jax.random.uniform(fk2, (num_classes,), jnp.float32, -bound, bound)
    return p


# ------------------------- Forward pass -------------------------

def rice_classifier_forward(params, x_nchw):
    """ResNet18 forward with a 5-class fc head (inference / eval-mode BN)."""
    x = jnp.transpose(x_nchw.astype(jnp.float32), (0, 2, 3, 1))  # NCHW -> NHWC
    x = x.astype(jnp.bfloat16)       # bf16 activations end-to-end (f32 accum)
    # stem: conv7x7/s2 + BN + ReLU + maxpool3x3/s2
    x = conv_bn(x, params["conv1"], *params["bn1"], stride=2, pad=3, relu=True)
    x = maxpool_3x3_s2_p1(x)
    # 4 stages x 2 BasicBlocks
    for layer in params["layers"]:
        for blk in layer:
            identity = x
            s = blk["stride"]
            out = conv_bn(x, blk["conv1"], *blk["bn1"], stride=s, pad=1,
                          relu=True)
            if blk["down_w"] is not None:
                identity = conv_bn(x, blk["down_w"], *blk["down_bn"],
                                   stride=s, pad=0, relu=False)
            x = conv_bn(out, blk["conv2"], *blk["bn2"], stride=1, pad=1,
                        relu=True, residual_nhwc=identity)
    # adaptive avg-pool to 1x1 + 5-class fc head (tiny; plain jnp per review)
    feat = jnp.mean(x.astype(jnp.float32), axis=(1, 2))          # (N, 512)
    logits = feat @ params["fc_w"].T + params["fc_b"]
    return logits


if __name__ == "__main__":
    key = jax.random.PRNGKey(0)
    pkey, xkey = jax.random.split(key)
    params = init_resnet18_params(pkey, num_classes=5)
    # Small NCHW input (ResNet18 stride-32 backbone needs >=32 spatial).
    x = jax.random.normal(xkey, (2, 3, 32, 32), jnp.float32)
    logits = rice_classifier_forward(params, x)
    logits = jax.block_until_ready(logits)
    assert logits.shape == (2, 5) and jnp.all(jnp.isfinite(logits))
    print("KERNEL_OK")
</pallas_src>

<mosaic_0001>
module attributes {stable_mosaic.version = 11 : i64} {
  func.func @_conv_tap_kernel(%arg0: i32, %arg1: i32, %arg2: i32, %arg3: memref<1x256x256xbf16, #tpu.memory_space<vmem>>, %arg4: memref<1x256x64xbf16, #tpu.memory_space<vmem>>, %arg5: memref<1x64xf32, #tpu.memory_space<vmem>>, %arg6: memref<256x64xbf16, #tpu.memory_space<vmem>>, %arg7: memref<256x64xf32, #tpu.memory_space<vmem>>) attributes {dimension_semantics = [#tpu.dimension_semantics<parallel>, #tpu.dimension_semantics<parallel>, #tpu.dimension_semantics<arbitrary>], iteration_bounds = array<i64: 2, 1, 1>, scalar_prefetch = 0 : i64, scratch_operands = 1 : i64, tpu.core_type = #tpu.core_type<tc>, window_params = [{transform_indices = @transform_0, window_bounds = array<i64: 1, 256, 256>}, {transform_indices = @transform_1, window_bounds = array<i64: 1, 256, 64>}, {transform_indices = @transform_2, window_bounds = array<i64: 1, 64>}, {transform_indices = @transform_3, window_bounds = array<i64: 256, 64>}]} {
    %c0_i32 = arith.constant 0 : i32
    %0 = arith.cmpi eq, %arg2, %c0_i32 : i32
    %1 = arith.extui %0 : i1 to i32
    %c0_i32_0 = arith.constant 0 : i32
    %2 = arith.cmpi ne, %1, %c0_i32_0 : i32
    scf.if %2 {
      %cst_12 = arith.constant 0.000000e+00 : f32
      %14 = vector.broadcast %cst_12 : f32 to vector<256x64xf32>
      %c0_13 = arith.constant 0 : index
      %c0_14 = arith.constant 0 : index
      %15 = vector.load %arg7[%c0_13, %c0_14] : memref<256x64xf32, #tpu.memory_space<vmem>>, vector<256x64xf32>
      tpu.vector_store %arg7[%c0_13, %c0_14], %14 {strides = array<i32>} : memref<256x64xf32, #tpu.memory_space<vmem>>, vector<256x64xf32>,
    } else {
    }
    %c0 = arith.constant 0 : index
    %c0_1 = arith.constant 0 : index
    %3 = vector.load %arg7[%c0, %c0_1] : memref<256x64xf32, #tpu.memory_space<vmem>>, vector<256x64xf32>
    %c0_2 = arith.constant 0 : index
    %c0_3 = arith.constant 0 : index
    %c0_4 = arith.constant 0 : index
    %4 = vector.load %arg3[%c0_2, %c0_3, %c0_4] : memref<1x256x256xbf16, #tpu.memory_space<vmem>>, vector<1x256x256xbf16>
    %5 = vector.shape_cast %4 : vector<1x256x256xbf16> to vector<256x256xbf16>
    %c0_5 = arith.constant 0 : index
    %c0_6 = arith.constant 0 : index
    %c0_7 = arith.constant 0 : index
    %6 = vector.load %arg4[%c0_5, %c0_6, %c0_7] : memref<1x256x64xbf16, #tpu.memory_space<vmem>>, vector<1x256x64xbf16>
    %7 = vector.shape_cast %6 : vector<1x256x64xbf16> to vector<256x64xbf16>
    %cst = arith.constant dense<0.000000e+00> : vector<256x64xf32>
    %8 = tpu.matmul %5, %7, %cst {dimension_numbers = #tpu.dot_dimension_numbers<[1], [0], [0], [1], [0, 0, 1, 1], [], []>} : vector<256x256xbf16>, vector<256x64xbf16>, vector<256x64xf32> -> vector<256x64xf32>
    %9 = arith.addf %3, %8 : vector<256x64xf32>
    %c0_8 = arith.constant 0 : index
    %c0_9 = arith.constant 0 : index
    %10 = vector.load %arg7[%c0_8, %c0_9] : memref<256x64xf32, #tpu.memory_space<vmem>>, vector<256x64xf32>
    tpu.vector_store %arg7[%c0_8, %c0_9], %9 {strides = array<i32>} : memref<256x64xf32, #tpu.memory_space<vmem>>, vector<256x64xf32>,
    %c0_i32_10 = arith.constant 0 : i32
    %11 = arith.cmpi eq, %arg2, %c0_i32_10 : i32
    %12 = arith.extui %11 : i1 to i32
    %c0_i32_11 = arith.constant 0 : i32
    %13 = arith.cmpi ne, %12, %c0_i32_11 : i32
    scf.if %13 {
      %c0_12 = arith.constant 0 : index
      %c0_13 = arith.constant 0 : index
      %14 = vector.load %arg7[%c0_12, %c0_13] : memref<256x64xf32, #tpu.memory_space<vmem>>, vector<256x64xf32>
      %c0_14 = arith.constant 0 : index
      %c0_15 = arith.constant 0 : index
      %15 = vector.load %arg5[%c0_14, %c0_15] : memref<1x64xf32, #tpu.memory_space<vmem>>, vector<1x64xf32>
      %16 = vector.broadcast %15 : vector<1x64xf32> to vector<256x64xf32>
      %17 = arith.addf %14, %16 : vector<256x64xf32>
      %cst_16 = arith.constant 0.000000e+00 : f32
      %18 = vector.broadcast %cst_16 : f32 to vector<256x64xf32>
      %19 = arith.maximumf %17, %18 : vector<256x64xf32>
      %20 = arith.truncf %19 : vector<256x64xf32> to vector<256x64xbf16>
      %c0_17 = arith.constant 0 : index
      %c0_18 = arith.constant 0 : index
      %21 = vector.load %arg6[%c0_17, %c0_18] : memref<256x64xbf16, #tpu.memory_space<vmem>>, vector<256x64xbf16>
      tpu.vector_store %arg6[%c0_17, %c0_18], %20 {strides = array<i32>} : memref<256x64xbf16, #tpu.memory_space<vmem>>, vector<256x64xbf16>,
    } else {
    }
    return
  }
  func.func @transform_0(%arg0: i32, %arg1: i32, %arg2: i32) -> (i32, i32, i32) {
    %c0_i32 = arith.constant 0 : i32
    %c0_i32_0 = arith.constant 0 : i32
    return %arg2, %arg0, %c0_i32 : i32, i32, i32
  }
  func.func @transform_1(%arg0: i32, %arg1: i32, %arg2: i32) -> (i32, i32, i32) {
    %c0_i32 = arith.constant 0 : i32
    %c0_i32_0 = arith.constant 0 : i32
    return %arg2, %c0_i32, %arg1 : i32, i32, i32
  }
  func.func @transform_2(%arg0: i32, %arg1: i32, %arg2: i32) -> (i32, i32) {
    %c0_i32 = arith.constant 0 : i32
    %c0_i32_0 = arith.constant 0 : i32
    return %c0_i32, %arg1 : i32, i32
  }
  func.func @transform_3(%arg0: i32, %arg1: i32, %arg2: i32) -> (i32, i32) {
    %c0_i32 = arith.constant 0 : i32
    return %arg0, %arg1 : i32, i32
  }
}

</mosaic_0001>

<llo_original>
// kernel: tpu_custom_call.1
$region0: #{tpu_custom_call.1}
  #allocation0 [shape = 'u32[]', space=smem, size = 0x4, offset = 0x4, fixed_abs, tag = 'smem constant byte address 0x4 - core index']
  #allocation1 [shape = 'u32[144,128]{1,0:T(1,128)}', space=vmem, size = 0x12000, scoped, tag = 'internal scratch']
  #allocation2 [shape = 'f32[256,64]{1,0:T(8,128)}', space=vmem, size = 0x20000, scoped, tag = 'scratch operand']
  %s0 = inlined_call_operand.hbm [shape: bf16[1,512,256], index: 0, kind: input, shape index: {}]
  %s1 = inlined_call_operand.vmem [shape: bf16[1,256,64], index: 1, kind: input, shape index: {}]
  %s2 = inlined_call_operand.vmem [shape: f32[1,64], index: 2, kind: input, shape index: {}]
  %s3 = inlined_call_operand.vmem [shape: bf16[512,64], index: 3, kind: output, shape index: {}]
  %s4 = sld [smem:[#allocation0]]
  $region57: #{tpu_custom_call.1} parent=0
    _
  %s6 = ssub.s32 1, %s4
  %s7 = scalar_select 0, %s6, %s4
  $region1: #{tpu_custom_call.1} parent=0
    #allocation3 [shape = 'u8[262144]{0}', space=vmem, size = 0x40000, scoped, tag = 'input window, operand 0']
    #allocation4 [shape = 's32[2]{0}', space=sflag, size = 0x8, scoped, tag = 'scoped memory for tpu_custom_call.1']
    %8 = vsyncpa [#allocation4], 0
    %s9 = scalar_lea.sflag [#allocation4], 1
    %10 = vsyncpa %s9, 0
    loop: start=0, step=1, limit=4
    $region2: #{tpu_custom_call.1} parent=1 // loop_pre_header
      _
    $region3: #{tpu_custom_call.1} parent=1 // loop_header
      %s12 = sphi 0, %s16
      %p13 = scmp.ge.s32.totalorder %s12, 4
      %s19 = sphi 0, %s38
      %s20 = sphi 0, %s34
      %s21 = sphi 0, %s30
      %s22 = sphi 0, %s19
      %s23 = sphi 0, %s20
      %s24 = sphi 0, %s21
      %s25 = sphi 0, %s22
      %s26 = sphi 0, %s23
      %s27 = sphi 0, %s24
      %s43 = sphi 0, %s45
      %s46 = sphi 0, %s43
      %s47 = sphi 0, %s46
      %s63 = sphi 0, %s47
      %s71 = sphi 0, %s73
      %s74 = sphi 0, %s71
      %s75 = sphi 0, %s74
      %s91 = sphi 0, %s75
      %s97 = sphi 0, %s99
      %s100 = sphi 0, %s97
      %s101 = sphi 0, %s100
      %s117 = sphi 0, %s101
      %s125 = sphi 0, %s127
      %s128 = sphi 0, %s125
      %s129 = sphi 0, %s128
      %s145 = sphi 0, %s129
    $region4: #{tpu_custom_call.1} parent=1 // loop_header_branch
      %15 = sbr.rel (%p13) target = $region8
    $region5: #{tpu_custom_call.1} parent=1 // loop_body
      %s17 = ssub.s32 %s12, 1
      %s18 = ssub.s32 %s12, 2
      %s28 = sadd.s32 1, %s21
      %p29 = scmp.ge.s32.totalorder %s28, 1
      %s30 = scalar_select %p29, 0, %s28
      %s31 = sadd.s32 1, %s20
      %s32 = scalar_select %p29, %s31, %s20
      %p33 = scmp.ge.s32.totalorder %s32, 1
      %s34 = scalar_select %p33, 0, %s32
      %s35 = sadd.s32 1, %s19
      %s36 = scalar_select %p33, %s35, %s19
      %p37 = scmp.ge.s32.totalorder %s36, 2
      %s38 = scalar_select %p37, 0, %s36
      %s39 = ssub.s32 %s21, %s30
      %s40 = ssub.s32 %s19, %s38
      %s41 = sor.u32 %s39, %s40
      %p42 = scmp.eq.s32.totalorder %s41, 0
      %s44 = sadd.s32 %s43, 1
      %s45 = scalar_select %p42, %s43, %s44
      %p48 = pneg %p42
      %p49 = scmp.eq.s32.totalorder %s12, 1
      %p50 = por %p48, %p49
      %p51 = scmp.ne.s32.totalorder %s43, %s46
      %p52 = scmp.eq.s32.totalorder %s12, 0
      %p53 = por %p51, %p52
      %p54 = scmp.ne.s32.totalorder %s43, %s46
      %p55 = scmp.eq.s32.totalorder %s17, 1
      %p56 = por %p54, %p55
      %p57 = scmp.ne.s32.totalorder %s46, %s47
      %p58 = scmp.eq.s32.totalorder %s17, 0
      %p59 = por %p57, %p58
      %p60 = scmp.ne.s32.totalorder %s46, %s47
      %p61 = scmp.eq.s32.totalorder %s18, 1
      %p62 = por %p60, %p61
      %p64 = scmp.ne.s32.totalorder %s47, %s63
      %p65 = scmp.eq.s32.totalorder %s18, 0
      %p66 = por %p64, %p65
      %s67 = ssub.s32 %s21, %s30
      %s68 = ssub.s32 %s20, %s34
      %s69 = sor.u32 %s67, %s68
      %p70 = scmp.eq.s32.totalorder %s69, 0
      %s72 = sadd.s32 %s71, 1
      %s73 = scalar_select %p70, %s71, %s72
      %p76 = pneg %p70
      %p77 = scmp.eq.s32.totalorder %s12, 1
      %p78 = por %p76, %p77
      %p79 = scmp.ne.s32.totalorder %s71, %s74
      %p80 = scmp.eq.s32.totalorder %s12, 0
      %p81 = por %p79, %p80
      %p82 = scmp.ne.s32.totalorder %s71, %s74
      %p83 = scmp.eq.s32.totalorder %s17, 1
      %p84 = por %p82, %p83
      %p85 = scmp.ne.s32.totalorder %s74, %s75
      %p86 = scmp.eq.s32.totalorder %s17, 0
      %p87 = por %p85, %p86
      %p88 = scmp.ne.s32.totalorder %s74, %s75
      %p89 = scmp.eq.s32.totalorder %s18, 1
      %p90 = por %p88, %p89
      %p92 = scmp.ne.s32.totalorder %s75, %s91
      %p93 = scmp.eq.s32.totalorder %s18, 0
      %p94 = por %p92, %p93
      %s95 = ssub.s32 %s20, %s34
      %p96 = scmp.eq.s32.totalorder %s95, 0
      %s98 = sadd.s32 %s97, 1
      %s99 = scalar_select %p96, %s97, %s98
      %p102 = pneg %p96
      %p103 = scmp.eq.s32.totalorder %s12, 1
      %p104 = por %p102, %p103
      %p105 = scmp.ne.s32.totalorder %s97, %s100
      %p106 = scmp.eq.s32.totalorder %s12, 0
      %p107 = por %p105, %p106
      %p108 = scmp.ne.s32.totalorder %s97, %s100
      %p109 = scmp.eq.s32.totalorder %s17, 1
      %p110 = por %p108, %p109
      %p111 = scmp.ne.s32.totalorder %s100, %s101
      %p112 = scmp.eq.s32.totalorder %s17, 0
      %p113 = por %p111, %p112
      %p114 = scmp.ne.s32.totalorder %s100, %s101
      %p115 = scmp.eq.s32.totalorder %s18, 1
      %p116 = por %p114, %p115
      %p118 = scmp.ne.s32.totalorder %s101, %s117
      %p119 = scmp.eq.s32.totalorder %s18, 0
      %p120 = por %p118, %p119
      %s121 = ssub.s32 %s19, %s38
      %s122 = ssub.s32 %s20, %s34
      %s123 = sor.u32 %s121, %s122
      %p124 = scmp.eq.s32.totalorder %s123, 0
      %s126 = sadd.s32 %s125, 1
      %s127 = scalar_select %p124, %s125, %s126
      %p130 = pneg %p124
      %p131 = scmp.eq.s32.totalorder %s12, 1
      %p132 = por %p130, %p131
      %p133 = scmp.ne.s32.totalorder %s125, %s128
      %p134 = scmp.eq.s32.totalorder %s12, 0
      %p135 = por %p133, %p134
      %p136 = scmp.ne.s32.totalorder %s125, %s128
      %p137 = scmp.eq.s32.totalorder %s17, 1
      %p138 = por %p136, %p137
      %p139 = scmp.ne.s32.totalorder %s128, %s129
      %p140 = scmp.eq.s32.totalorder %s17, 0
      %p141 = por %p139, %p140
      %p142 = scmp.ne.s32.totalorder %s128, %s129
      %p143 = scmp.eq.s32.totalorder %s18, 1
      %p144 = por %p142, %p143
      %p146 = scmp.ne.s32.totalorder %s129, %s145
      %p147 = scmp.eq.s32.totalorder %s18, 0
      %p148 = por %p146, %p147
      %p149 = scmp.le.s32.totalorder 1, %s12
      %p150 = scmp.lt.s32.totalorder %s12, 3
      %p151 = pnand %p149, %p150
      %p152 = pneg %p151
      // Predicated region
      $region9: #{tpu_custom_call.1} parent=5 // pred_check
        _
      $region10: #{tpu_custom_call.1} parent=5 // pred_check_branch
        %154 = sbr.rel (%p151) target = $region12
      $region11: #{tpu_custom_call.1} parent=5 // pred_region
        %s155 = ssub.s32 %s12, 1
        // Predicated region
        $region13: #{tpu_custom_call.1} parent=11 // pred_check
          %p156 = pneg %p87
        $region14: #{tpu_custom_call.1} parent=11 // pred_check_branch
          %158 = sbr.rel (%p156) target = $region16
        $region15: #{tpu_custom_call.1} parent=11 // pred_region
          %p159 = scmp.lt.s32.totalorder %s24, 0
          %s160 = scalar_select %p159, %s24, 0
          %p161 = scmp.lt.s32.totalorder %s23, 0
          %s162 = scalar_select %p161, %s23, 0
          %s163 = smul.addr %s160, 32
          %s164 = sadd.s32 %s162, %s163
          %s165 = smul.addr %s164, 4
          %s166 = scalar_lea.vmem %s1, %s165
        $region16: #{tpu_custom_call.1} parent=11 // pred_fallthru
          _
        // Predicated region
        $region17: #{tpu_custom_call.1} parent=11 // pred_check
          %p167 = pneg %p113
        $region18: #{tpu_custom_call.1} parent=11 // pred_check_branch
          %169 = sbr.rel (%p167) target = $region20
        $region19: #{tpu_custom_call.1} parent=11 // pred_region
          %p170 = scmp.lt.s32.totalorder %s23, 0
          %s171 = scalar_select %p170, %s23, 0
          %s172 = scalar_lea.vmem %s2, %s171
        $region20: #{tpu_custom_call.1} parent=11 // pred_fallthru
          _
      $region12: #{tpu_custom_call.1} parent=5 // pred_fallthru
        _
      %p173 = scmp.lt.s32.totalorder %s12, 2
      // Predicated region
      $region21: #{tpu_custom_call.1} parent=5 // pred_check
        %p174 = pneg %p173
      $region22: #{tpu_custom_call.1} parent=5 // pred_check_branch
        %176 = sbr.rel (%p174) target = $region24
      $region23: #{tpu_custom_call.1} parent=5 // pred_region
        // Predicated region
        $region25: #{tpu_custom_call.1} parent=23 // pred_check
          %p177 = pneg %p53
        $region26: #{tpu_custom_call.1} parent=23 // pred_check_branch
          %179 = sbr.rel (%p177) target = $region28
        $region27: #{tpu_custom_call.1} parent=23 // pred_region
          %s180 = sand.u32 %s43, 1
          %s181 = scalar_lea.sflag [#allocation4], %s180
          %s182 = sand.u32 %s43, 1
          %s183 = smul.addr %s182, 256
          %s184 = scalar_lea.vmem [#allocation3], %s183
          %s185 = smul.u32 32, %s19
          %s187 = ssub.s32 4096, 4096
          %188 = vsyncadd %s181, %s187
          %s189 = smul.addr %s185, 2
          %s190 = smul.addr %s21, 128
          %s191 = sadd.s32 %s189, %s190
          %s192 = smul.addr %s191, 64
          %s193 = scalar_lea.hbm %s0, %s192
          %s194 = sshll.u32 %s184, 4
          %s195 = int_to_ptr.vmem [resolvable:$true] %s194
          %200 = dma.hbm_to_vmem [thread:$0]  %s193, 4096, %s195, %s181, 128, 128, 8
        $region28: #{tpu_custom_call.1} parent=23 // pred_fallthru
          _
      $region24: #{tpu_custom_call.1} parent=5 // pred_fallthru
        _
      %p201 = scmp.le.s32.totalorder 1, %s12
      %p202 = scmp.lt.s32.totalorder %s12, 3
      %p203 = pnand %p201, %p202
      %p204 = pneg %p203
      // Predicated region
      $region29: #{tpu_custom_call.1} parent=5 // pred_check
        _
      $region30: #{tpu_custom_call.1} parent=5 // pred_check_branch
        %206 = sbr.rel (%p203) target = $region32
      $region31: #{tpu_custom_call.1} parent=5 // pred_region
        %s207 = ssub.s32 %s12, 1
        %s208 = sand.u32 %s46, 1
        %s209 = scalar_lea.sflag [#allocation4], %s208
        %s210 = sand.u32 %s46, 1
        %s211 = smul.addr %s210, 256
        %s212 = scalar_lea.vmem [#allocation3], %s211
        // Predicated region
        $region33: #{tpu_custom_call.1} parent=31 // pred_check
          %p213 = pneg %p59
        $region34: #{tpu_custom_call.1} parent=31 // pred_check_branch
          %215 = sbr.rel (%p213) target = $region36
        $region35: #{tpu_custom_call.1} parent=31 // pred_region
          %216 = dma.done %s209, 4096
        $region36: #{tpu_custom_call.1} parent=31 // pred_fallthru
          _
        %s217 = sand.u32 %s46, 1
        %s218 = scalar_lea.sflag [#allocation4], %s217
        %s219 = sand.u32 %s46, 1
        %s220 = smul.addr %s219, 256
        %s221 = scalar_lea.vmem [#allocation3], %s220
        %p222 = pneg %p59
        %p223 = pneg %p56
        %p224 = scmp.lt.s32.totalorder %s24, 0
        %s225 = scalar_select %p224, %s24, 0
        %p226 = scmp.lt.s32.totalorder %s23, 0
        %s227 = scalar_select %p226, %s23, 0
        %s228 = smul.addr %s225, 32
        %s229 = sadd.s32 %s227, %s228
        %s230 = smul.addr %s229, 4
        %s231 = scalar_lea.vmem %s1, %s230
        %p232 = pneg %p87
        %p233 = pneg %p84
        %p234 = scmp.lt.s32.totalorder %s23, 0
        %s235 = scalar_select %p234, %s23, 0
        %s236 = scalar_lea.vmem %s2, %s235
        %p237 = pneg %p113
        %p238 = pneg %p110
        %p239 = pneg %p141
        %p240 = pneg %p138
        %s241 = smul.u32 32, %s22
        %p242 = scmp.lt.s32.totalorder %s241, 63
        %s243 = scalar_select %p242, %s241, 63
        %p244 = scmp.lt.s32.totalorder %s23, 0
        %s245 = scalar_select %p244, %s23, 0
        %s246 = sadd.s32 %s245, %s243
        %s247 = smul.addr %s246, 4
        %s248 = scalar_lea.vmem %s3, %s247
        %s249 = smul.u32 32, %s22
        %p250 = scmp.lt.s32.totalorder %s24, 0
        %s251 = scalar_select %p250, %s24, 0
        %p252 = scmp.lt.s32.totalorder %s23, 0
        %s253 = scalar_select %p252, %s23, 0
        %s254 = smul.addr %s251, 32
        %s255 = sadd.s32 %s253, %s254
        %s256 = smul.addr %s255, 4
        %s257 = scalar_lea.vmem %s1, %s256
        %p258 = scmp.lt.s32.totalorder %s23, 0
        %s259 = scalar_select %p258, %s23, 0
        %s260 = scalar_lea.vmem %s2, %s259
        %s261 = smul.u32 32, %s22
        %p262 = scmp.lt.s32.totalorder %s261, 63
        %s263 = scalar_select %p262, %s261, 63
        %p264 = scmp.lt.s32.totalorder %s23, 0
        %s265 = scalar_select %p264, %s23, 0
        %s266 = sadd.s32 %s265, %s263
        %s267 = smul.addr %s266, 4
        %s268 = scalar_lea.vmem %s3, %s267
        %s269 = smul.u32 32, %s22
        %p271 = scmp.eq.s32.totalorder %s24, 0
        // Predicated region
        $region37: #{tpu_custom_call.1} parent=31 // pred_check
          %p272 = pneg %p271
        $region38: #{tpu_custom_call.1} parent=31 // pred_check_branch
          %274 = sbr.rel (%p272) target = $region40
        $region39: #{tpu_custom_call.1} parent=31 // pred_region
          %vm275 = vcmask 523264
          %276 = vst.msk [vmem:[#allocation2] sm:$0xff] %vm275, 0.0
          %277 = vst.msk [vmem:[#allocation2 + $0x8] sm:$0xff] %vm275, 0.0
          %278 = vst.msk [vmem:[#allocation2 + $0x10] sm:$0xff] %vm275, 0.0
          %279 = vst.msk [vmem:[#allocation2 + $0x18] sm:$0xff] %vm275, 0.0
          %280 = vst.msk [vmem:[#allocation2 + $0x20] sm:$0xff] %vm275, 0.0
          %281 = vst.msk [vmem:[#allocation2 + $0x28] sm:$0xff] %vm275, 0.0
          %282 = vst.msk [vmem:[#allocation2 + $0x30] sm:$0xff] %vm275, 0.0
          %283 = vst.msk [vmem:[#allocation2 + $0x38] sm:$0xff] %vm275, 0.0
          %284 = vst.msk [vmem:[#allocation2 + $0x40] sm:$0xff] %vm275, 0.0
          %285 = vst.msk [vmem:[#allocation2 + $0x48] sm:$0xff] %vm275, 0.0
          %286 = vst.msk [vmem:[#allocation2 + $0x50] sm:$0xff] %vm275, 0.0
          %287 = vst.msk [vmem:[#allocation2 + $0x58] sm:$0xff] %vm275, 0.0
          %288 = vst.msk [vmem:[#allocation2 + $0x60] sm:$0xff] %vm275, 0.0
          %289 = vst.msk [vmem:[#allocation2 + $0x68] sm:$0xff] %vm275, 0.0
          %290 = vst.msk [vmem:[#allocation2 + $0x70] sm:$0xff] %vm275, 0.0
          %291 = vst.msk [vmem:[#allocation2 + $0x78] sm:$0xff] %vm275, 0.0
          %292 = vst.msk [vmem:[#allocation2 + $0x80] sm:$0xff] %vm275, 0.0
          %293 = vst.msk [vmem:[#allocation2 + $0x88] sm:$0xff] %vm275, 0.0
          %294 = vst.msk [vmem:[#allocation2 + $0x90] sm:$0xff] %vm275, 0.0
          %295 = vst.msk [vmem:[#allocation2 + $0x98] sm:$0xff] %vm275, 0.0
          %296 = vst.msk [vmem:[#allocation2 + $0xa0] sm:$0xff] %vm275, 0.0
          %297 = vst.msk [vmem:[#allocation2 + $0xa8] sm:$0xff] %vm275, 0.0
          %298 = vst.msk [vmem:[#allocation2 + $0xb0] sm:$0xff] %vm275, 0.0
          %299 = vst.msk [vmem:[#allocation2 + $0xb8] sm:$0xff] %vm275, 0.0
          %300 = vst.msk [vmem:[#allocation2 + $0xc0] sm:$0xff] %vm275, 0.0
          %301 = vst.msk [vmem:[#allocation2 + $0xc8] sm:$0xff] %vm275, 0.0
          %302 = vst.msk [vmem:[#allocation2 + $0xd0] sm:$0xff] %vm275, 0.0
          %303 = vst.msk [vmem:[#allocation2 + $0xd8] sm:$0xff] %vm275, 0.0
          %304 = vst.msk [vmem:[#allocation2 + $0xe0] sm:$0xff] %vm275, 0.0
          %305 = vst.msk [vmem:[#allocation2 + $0xe8] sm:$0xff] %vm275, 0.0
          %306 = vst.msk [vmem:[#allocation2 + $0xf0] sm:$0xff] %vm275, 0.0
          %307 = vst.msk [vmem:[#allocation2 + $0xf8] sm:$0xff] %vm275, 0.0
        $region40: #{tpu_custom_call.1} parent=31 // pred_fallthru
          _
        %v308 = vld [vmem:[#allocation2] sm:$0xff]
        %v309 = vld [vmem:[#allocation2 + $0x8] sm:$0xff]
        %v310 = vld [vmem:[#allocation2 + $0x10] sm:$0xff]
        %v311 = vld [vmem:[#allocation2 + $0x18] sm:$0xff]
        %v312 = vld [vmem:[#allocation2 + $0x20] sm:$0xff]
        %v313 = vld [vmem:[#allocation2 + $0x28] sm:$0xff]
        %v314 = vld [vmem:[#allocation2 + $0x30] sm:$0xff]
        %v315 = vld [vmem:[#allocation2 + $0x38] sm:$0xff]
        %v316 = vld [vmem:[#allocation2 + $0x40] sm:$0xff]
        %v317 = vld [vmem:[#allocation2 + $0x48] sm:$0xff]
        %v318 = vld [vmem:[#allocation2 + $0x50] sm:$0xff]
        %v319 = vld [vmem:[#allocation2 + $0x58] sm:$0xff]
        %v320 = vld [vmem:[#allocation2 + $0x60] sm:$0xff]
        %v321 = vld [vmem:[#allocation2 + $0x68] sm:$0xff]
        %v322 = vld [vmem:[#allocation2 + $0x70] sm:$0xff]
        %v323 = vld [vmem:[#allocation2 + $0x78] sm:$0xff]
        %v324 = vld [vmem:[#allocation2 + $0x80] sm:$0xff]
        %v325 = vld [vmem:[#allocation2 + $0x88] sm:$0xff]
        %v326 = vld [vmem:[#allocation2 + $0x90] sm:$0xff]
        %v327 = vld [vmem:[#allocation2 + $0x98] sm:$0xff]
        %v328 = vld [vmem:[#allocation2 + $0xa0] sm:$0xff]
        %v329 = vld [vmem:[#allocation2 + $0xa8] sm:$0xff]
        %v330 = vld [vmem:[#allocation2 + $0xb0] sm:$0xff]
        %v331 = vld [vmem:[#allocation2 + $0xb8] sm:$0xff]
        %v332 = vld [vmem:[#allocation2 + $0xc0] sm:$0xff]
        %v333 = vld [vmem:[#allocation2 + $0xc8] sm:$0xff]
        %v334 = vld [vmem:[#allocation2 + $0xd0] sm:$0xff]
        %v335 = vld [vmem:[#allocation2 + $0xd8] sm:$0xff]
        %v336 = vld [vmem:[#allocation2 + $0xe0] sm:$0xff]
        %v337 = vld [vmem:[#allocation2 + $0xe8] sm:$0xff]
        %v338 = vld [vmem:[#allocation2 + $0xf0] sm:$0xff]
        %v339 = vld [vmem:[#allocation2 + $0xf8] sm:$0xff]
        %v340 = vld [vmem:[%s212] sm:$0xff]
        %v341 = vld [vmem:[%s212 + $0x8] sm:$0xff]
        %v342 = vld [vmem:[%s212 + $0x10] sm:$0xff]
        %v343 = vld [vmem:[%s212 + $0x18] sm:$0xff]
        %v344 = vld [vmem:[%s212 + $0x20] sm:$0xff]
        %v345 = vld [vmem:[%s212 + $0x28] sm:$0xff]
        %v346 = vld [vmem:[%s212 + $0x30] sm:$0xff]
        %v347 = vld [vmem:[%s212 + $0x38] sm:$0xff]
        %v348 = vld [vmem:[%s212 + $0x40] sm:$0xff]
        %v349 = vld [vmem:[%s212 + $0x48] sm:$0xff]
        %v350 = vld [vmem:[%s212 + $0x50] sm:$0xff]
        %v351 = vld [vmem:[%s212 + $0x58] sm:$0xff]
        %v352 = vld [vmem:[%s212 + $0x60] sm:$0xff]
        %v353 = vld [vmem:[%s212 + $0x68] sm:$0xff]
        %v354 = vld [vmem:[%s212 + $0x70] sm:$0xff]
        %v355 = vld [vmem:[%s212 + $0x78] sm:$0xff]
        %v356 = vld [vmem:[%s212 + $0x80] sm:$0xff]
        %v357 = vld [vmem:[%s212 + $0x88] sm:$0xff]
        %v358 = vld [vmem:[%s212 + $0x90] sm:$0xff]
        %v359 = vld [vmem:[%s212 + $0x98] sm:$0xff]
        %v360 = vld [vmem:[%s212 + $0xa0] sm:$0xff]
        %v361 = vld [vmem:[%s212 + $0xa8] sm:$0xff]
        %v362 = vld [vmem:[%s212 + $0xb0] sm:$0xff]
        %v363 = vld [vmem:[%s212 + $0xb8] sm:$0xff]
        %v364 = vld [vmem:[%s212 + $0xc0] sm:$0xff]
        %v365 = vld [vmem:[%s212 + $0xc8] sm:$0xff]
        %v366 = vld [vmem:[%s212 + $0xd0] sm:$0xff]
        %v367 = vld [vmem:[%s212 + $0xd8] sm:$0xff]
        %v368 = vld [vmem:[%s212 + $0xe0] sm:$0xff]
        %v369 = vld [vmem:[%s212 + $0xe8] sm:$0xff]
        %v370 = vld [vmem:[%s212 + $0xf0] sm:$0xff]
        %v371 = vld [vmem:[%s212 + $0xf8] sm:$0xff]
        %v372 = vld [vmem:[%s257] sm:$0xf]
        %v373 = vld [vmem:[%s257 + $0x4] sm:$0xf]
        %v374 = vld [vmem:[%s257 + $0x8] sm:$0xf]
        %v375 = vld [vmem:[%s257 + $0xc] sm:$0xf]
        %v376 = vld [vmem:[%s257 + $0x10] sm:$0xf]
        %v377 = vld [vmem:[%s257 + $0x14] sm:$0xf]
        %v378 = vld [vmem:[%s257 + $0x18] sm:$0xf]
        %v379 = vld [vmem:[%s257 + $0x1c] sm:$0xf]
        %v380 = vld [vmem:[%s257 + $0x20] sm:$0xf]
        %v381 = vld [vmem:[%s257 + $0x24] sm:$0xf]
        %v382 = vld [vmem:[%s257 + $0x28] sm:$0xf]
        %v383 = vld [vmem:[%s257 + $0x2c] sm:$0xf]
        %v384 = vld [vmem:[%s257 + $0x30] sm:$0xf]
        %v385 = vld [vmem:[%s257 + $0x34] sm:$0xf]
        %v386 = vld [vmem:[%s257 + $0x38] sm:$0xf]
        %v387 = vld [vmem:[%s257 + $0x3c] sm:$0xf]
        %v388 = vld [vmem:[%s257 + $0x40] sm:$0xf]
        %v389 = vld [vmem:[%s257 + $0x44] sm:$0xf]
        %v390 = vld [vmem:[%s257 + $0x48] sm:$0xf]
        %v391 = vld [vmem:[%s257 + $0x4c] sm:$0xf]
        %v392 = vld [vmem:[%s257 + $0x50] sm:$0xf]
        %v393 = vld [vmem:[%s257 + $0x54] sm:$0xf]
        %v394 = vld [vmem:[%s257 + $0x58] sm:$0xf]
        %v395 = vld [vmem:[%s257 + $0x5c] sm:$0xf]
        %v396 = vld [vmem:[%s257 + $0x60] sm:$0xf]
        %v397 = vld [vmem:[%s257 + $0x64] sm:$0xf]
        %v398 = vld [vmem:[%s257 + $0x68] sm:$0xf]
        %v399 = vld [vmem:[%s257 + $0x6c] sm:$0xf]
        %v400 = vld [vmem:[%s257 + $0x70] sm:$0xf]
        %v401 = vld [vmem:[%s257 + $0x74] sm:$0xf]
        %v402 = vld [vmem:[%s257 + $0x78] sm:$0xf]
        %v403 = vld [vmem:[%s257 + $0x7c] sm:$0xf]
        %v436 = vunpack.c.l.b16 %v340
        %v437 = vunpack.c.h.b16 %v340
        %v438 = vunpack.c.l.b16 %v341
        %v439 = vunpack.c.h.b16 %v341
        %v440 = vunpack.c.l.b16 %v342
        %v441 = vunpack.c.h.b16 %v342
        %v442 = vunpack.c.l.b16 %v343
        %v443 = vunpack.c.h.b16 %v343
        %v444 = vunpack.c.l.b16 %v344
        %v445 = vunpack.c.h.b16 %v344
        %v446 = vunpack.c.l.b16 %v345
        %v447 = vunpack.c.h.b16 %v345
        %v448 = vunpack.c.l.b16 %v346
        %v449 = vunpack.c.h.b16 %v346
        %v450 = vunpack.c.l.b16 %v347
        %v451 = vunpack.c.h.b16 %v347
        %v452 = vunpack.c.l.b16 %v348
        %v453 = vunpack.c.h.b16 %v348
        %v454 = vunpack.c.l.b16 %v349
        %v455 = vunpack.c.h.b16 %v349
        %v456 = vunpack.c.l.b16 %v350
        %v457 = vunpack.c.h.b16 %v350
        %v458 = vunpack.c.l.b16 %v351
        %v459 = vunpack.c.h.b16 %v351
        %v460 = vunpack.c.l.b16 %v352
        %v461 = vunpack.c.h.b16 %v352
        %v462 = vunpack.c.l.b16 %v353
        %v463 = vunpack.c.h.b16 %v353
        %v464 = vunpack.c.l.b16 %v354
        %v465 = vunpack.c.h.b16 %v354
        %v466 = vunpack.c.l.b16 %v355
        %v467 = vunpack.c.h.b16 %v355
        %v468 = vunpack.c.l.b16 %v356
        %v469 = vunpack.c.h.b16 %v356
        %v470 = vunpack.c.l.b16 %v357
        %v471 = vunpack.c.h.b16 %v357
        %v472 = vunpack.c.l.b16 %v358
        %v473 = vunpack.c.h.b16 %v358
        %v474 = vunpack.c.l.b16 %v359
        %v475 = vunpack.c.h.b16 %v359
        %v476 = vunpack.c.l.b16 %v360
        %v477 = vunpack.c.h.b16 %v360
        %v478 = vunpack.c.l.b16 %v361
        %v479 = vunpack.c.h.b16 %v361
        %v480 = vunpack.c.l.b16 %v362
        %v481 = vunpack.c.h.b16 %v362
        %v482 = vunpack.c.l.b16 %v363
        %v483 = vunpack.c.h.b16 %v363
        %v484 = vunpack.c.l.b16 %v364
        %v485 = vunpack.c.h.b16 %v364
        %v486 = vunpack.c.l.b16 %v365
        %v487 = vunpack.c.h.b16 %v365
        %v488 = vunpack.c.l.b16 %v366
        %v489 = vunpack.c.h.b16 %v366
        %v490 = vunpack.c.l.b16 %v367
        %v491 = vunpack.c.h.b16 %v367
        %v492 = vunpack.c.l.b16 %v368
        %v493 = vunpack.c.h.b16 %v368
        %v494 = vunpack.c.l.b16 %v369
        %v495 = vunpack.c.h.b16 %v369
        %v496 = vunpack.c.l.b16 %v370
        %v497 = vunpack.c.h.b16 %v370
        %v498 = vunpack.c.l.b16 %v371
        %v499 = vunpack.c.h.b16 %v371
        %v500 = vpack.c.b16 %v438, %v436
        %v501 = vpack.c.b16 %v439, %v437
        %v502 = vpack.c.b16 %v442, %v440
        %v503 = vpack.c.b16 %v443, %v441
        %v504 = vpack.c.b16 %v446, %v444
        %v505 = vpack.c.b16 %v447, %v445
        %v506 = vpack.c.b16 %v450, %v448
        %v507 = vpack.c.b16 %v451, %v449
        %v508 = vpack.c.b16 %v454, %v452
        %v509 = vpack.c.b16 %v455, %v453
        %v510 = vpack.c.b16 %v458, %v456
        %v511 = vpack.c.b16 %v459, %v457
        %v512 = vpack.c.b16 %v462, %v460
        %v513 = vpack.c.b16 %v463, %v461
        %v514 = vpack.c.b16 %v466, %v464
        %v515 = vpack.c.b16 %v467, %v465
        %v516 = vpack.c.b16 %v470, %v468
        %v517 = vpack.c.b16 %v471, %v469
        %v518 = vpack.c.b16 %v474, %v472
        %v519 = vpack.c.b16 %v475, %v473
        %v520 = vpack.c.b16 %v478, %v476
        %v521 = vpack.c.b16 %v479, %v477
        %v522 = vpack.c.b16 %v482, %v480
        %v523 = vpack.c.b16 %v483, %v481
        %v524 = vpack.c.b16 %v486, %v484
        %v525 = vpack.c.b16 %v487, %v485
        %v526 = vpack.c.b16 %v490, %v488
        %v527 = vpack.c.b16 %v491, %v489
        %v528 = vpack.c.b16 %v494, %v492
        %v529 = vpack.c.b16 %v495, %v493
        %v530 = vpack.c.b16 %v498, %v496
        %v531 = vpack.c.b16 %v499, %v497
        %v596 = vunpack.c.l.b16 %v372
        %v597 = vunpack.c.l.b16 %v373
        %v598 = vunpack.c.l.b16 %v374
        %v599 = vunpack.c.l.b16 %v375
        %v600 = vunpack.c.l.b16 %v376
        %v601 = vunpack.c.l.b16 %v377
        %v602 = vunpack.c.l.b16 %v378
        %v603 = vunpack.c.l.b16 %v379
        %v604 = vunpack.c.l.b16 %v380
        %v605 = vunpack.c.l.b16 %v381
        %v606 = vunpack.c.l.b16 %v382
        %v607 = vunpack.c.l.b16 %v383
        %v608 = vunpack.c.l.b16 %v384
        %v609 = vunpack.c.l.b16 %v385
        %v610 = vunpack.c.l.b16 %v386
        %v611 = vunpack.c.l.b16 %v387
        %v612 = vunpack.c.l.b16 %v388
        %v613 = vunpack.c.l.b16 %v389
        %v614 = vunpack.c.l.b16 %v390
        %v615 = vunpack.c.l.b16 %v391
        %v616 = vunpack.c.l.b16 %v392
        %v617 = vunpack.c.l.b16 %v393
        %v618 = vunpack.c.l.b16 %v394
        %v619 = vunpack.c.l.b16 %v395
        %v620 = vunpack.c.l.b16 %v396
        %v621 = vunpack.c.l.b16 %v397
        %v622 = vunpack.c.l.b16 %v398
        %v623 = vunpack.c.l.b16 %v399
        %v624 = vunpack.c.l.b16 %v400
        %v625 = vunpack.c.l.b16 %v401
        %v626 = vunpack.c.l.b16 %v402
        %v627 = vunpack.c.l.b16 %v403
        %v628 = vpack.c.b16 %v597, %v596
        %v629 = vpack.c.b16 %v599, %v598
        %v630 = vpack.c.b16 %v601, %v600
        %v631 = vpack.c.b16 %v603, %v602
        %v632 = vpack.c.b16 %v605, %v604
        %v633 = vpack.c.b16 %v607, %v606
        %v634 = vpack.c.b16 %v609, %v608
        %v635 = vpack.c.b16 %v611, %v610
        %v636 = vpack.c.b16 %v613, %v612
        %v637 = vpack.c.b16 %v615, %v614
        %v638 = vpack.c.b16 %v617, %v616
        %v639 = vpack.c.b16 %v619, %v618
        %v640 = vpack.c.b16 %v621, %v620
        %v641 = vpack.c.b16 %v623, %v622
        %v642 = vpack.c.b16 %v625, %v624
        %v643 = vpack.c.b16 %v627, %v626
        %660 = vmatprep.subr.bf16.mxu0 0
        %661 = vmatpush1.bf16.msra.mxu0 %v635
        %662 = vmatprep.subr.bf16.mxu0 0
        %663 = vmatpush1.bf16.msra.mxu0 %v634
        %664 = vmatprep.subr.bf16.mxu0 0
        %665 = vmatpush1.bf16.msra.mxu0 %v633
        %666 = vmatprep.subr.bf16.mxu0 0
        %667 = vmatpush1.bf16.msra.mxu0 %v632
        %668 = vmatprep.subr.bf16.mxu0 0
        %669 = vmatpush1.bf16.msra.mxu0 %v631
        %670 = vmatprep.subr.bf16.mxu0 0
        %671 = vmatpush1.bf16.msra.mxu0 %v630
        %672 = vmatprep.subr.bf16.mxu0 0
        %673 = vmatpush1.bf16.msra.mxu0 %v629
        %674 = vmatprep.subr.bf16.mxu0 0
        %675 = vmatpush1.bf16.msra.mxu0 %v628
        %676 = vmatprep.subr.bf16.mxu0 0
        %677 = vmatpush2.bf16.msra.mxu0 %v643
        %678 = vmatprep.subr.bf16.mxu0 0
        %679 = vmatpush2.bf16.msra.mxu0 %v642
        %680 = vmatprep.subr.bf16.mxu0 0
        %681 = vmatpush2.bf16.msra.mxu0 %v641
        %682 = vmatprep.subr.bf16.mxu0 0
        %683 = vmatpush2.bf16.msra.mxu0 %v640
        %684 = vmatprep.subr.bf16.mxu0 0
        %685 = vmatpush2.bf16.msra.mxu0 %v639
        %686 = vmatprep.subr.bf16.mxu0 0
        %687 = vmatpush2.bf16.msra.mxu0 %v638
        %688 = vmatprep.subr.bf16.mxu0 0
        %689 = vmatpush2.bf16.msra.mxu0 %v637
        %690 = vmatprep.subr.bf16.mxu0 0
        %691 = vmatpush2.bf16.msra.mxu0 %v636
        %692 = vmatprep.mubr.bf16.mxu0 %v501
        %693 = vmatmul.mubr.bf16.gmra.mxu0 %v500
        %v694 = vpop.f32.mrf.mxu0
        %v695 = vadd.f32 0.0, %v694
        %v696 = vpop.f32.mrf.mxu0
        %v697 = vpop.f32.mrf.mxu0
        %v698 = vadd.f32 0.0, %v697
        %v699 = vpop.f32.mrf.mxu0
        %700 = vmatprep.mubr.bf16.mxu0 %v503
        %701 = vmatmul.mubr.bf16.gmra.mxu0 %v502
        %v702 = vpop.f32.mrf.mxu0
        %v703 = vadd.f32 0.0, %v702
        %v704 = vpop.f32.mrf.mxu0
        %v705 = vpop.f32.mrf.mxu0
        %v706 = vadd.f32 0.0, %v705
        %v707 = vpop.f32.mrf.mxu0
        %708 = vmatprep.mubr.bf16.mxu0 %v505
        %709 = vmatmul.mubr.bf16.gmra.mxu0 %v504
        %v710 = vpop.f32.mrf.mxu0
        %v711 = vadd.f32 0.0, %v710
        %v712 = vpop.f32.mrf.mxu0
        %v713 = vpop.f32.mrf.mxu0
        %v714 = vadd.f32 0.0, %v713
        %v715 = vpop.f32.mrf.mxu0
        %716 = vmatprep.mubr.bf16.mxu0 %v507
        %717 = vmatmul.mubr.bf16.gmra.mxu0 %v506
        %v718 = vpop.f32.mrf.mxu0
        %v719 = vadd.f32 0.0, %v718
        %v720 = vpop.f32.mrf.mxu0
        %v721 = vpop.f32.mrf.mxu0
        %v722 = vadd.f32 0.0, %v721
        %v723 = vpop.f32.mrf.mxu0
        %724 = vmatprep.mubr.bf16.mxu0 %v509
        %725 = vmatmul.mubr.bf16.gmra.mxu0 %v508
        %v726 = vpop.f32.mrf.mxu0
        %v727 = vadd.f32 0.0, %v726
        %v728 = vpop.f32.mrf.mxu0
        %v729 = vpop.f32.mrf.mxu0
        %v730 = vadd.f32 0.0, %v729
        %v731 = vpop.f32.mrf.mxu0
        %732 = vmatprep.mubr.bf16.mxu0 %v511
        %733 = vmatmul.mubr.bf16.gmra.mxu0 %v510
        %v734 = vpop.f32.mrf.mxu0
        %v735 = vadd.f32 0.0, %v734
        %v736 = vpop.f32.mrf.mxu0
        %v737 = vpop.f32.mrf.mxu0
        %v738 = vadd.f32 0.0, %v737
        %v739 = vpop.f32.mrf.mxu0
        %740 = vmatprep.mubr.bf16.mxu0 %v513
        %741 = vmatmul.mubr.bf16.gmra.mxu0 %v512
        %v742 = vpop.f32.mrf.mxu0
        %v743 = vadd.f32 0.0, %v742
        %v744 = vpop.f32.mrf.mxu0
        %v745 = vpop.f32.mrf.mxu0
        %v746 = vadd.f32 0.0, %v745
        %v747 = vpop.f32.mrf.mxu0
        %748 = vmatprep.mubr.bf16.mxu0 %v515
        %749 = vmatmul.mubr.bf16.gmra.mxu0 %v514
        %v750 = vpop.f32.mrf.mxu0
        %v751 = vadd.f32 0.0, %v750
        %v752 = vpop.f32.mrf.mxu0
        %v753 = vpop.f32.mrf.mxu0
        %v754 = vadd.f32 0.0, %v753
        %v755 = vpop.f32.mrf.mxu0
        %756 = vmatprep.mubr.bf16.mxu0 %v517
        %757 = vmatmul.mubr.bf16.gmra.mxu0 %v516
        %v758 = vpop.f32.mrf.mxu0
        %v759 = vadd.f32 0.0, %v758
        %v760 = vpop.f32.mrf.mxu0
        %v761 = vpop.f32.mrf.mxu0
        %v762 = vadd.f32 0.0, %v761
        %v763 = vpop.f32.mrf.mxu0
        %764 = vmatprep.mubr.bf16.mxu0 %v519
        %765 = vmatmul.mubr.bf16.gmra.mxu0 %v518
        %v766 = vpop.f32.mrf.mxu0
        %v767 = vadd.f32 0.0, %v766
        %v768 = vpop.f32.mrf.mxu0
        %v769 = vpop.f32.mrf.mxu0
        %v770 = vadd.f32 0.0, %v769
        %v771 = vpop.f32.mrf.mxu0
        %772 = vmatprep.mubr.bf16.mxu0 %v521
        %773 = vmatmul.mubr.bf16.gmra.mxu0 %v520
        %v774 = vpop.f32.mrf.mxu0
        %v775 = vadd.f32 0.0, %v774
        %v776 = vpop.f32.mrf.mxu0
        %v777 = vpop.f32.mrf.mxu0
        %v778 = vadd.f32 0.0, %v777
        %v779 = vpop.f32.mrf.mxu0
        %780 = vmatprep.mubr.bf16.mxu0 %v523
        %781 = vmatmul.mubr.bf16.gmra.mxu0 %v522
        %v782 = vpop.f32.mrf.mxu0
        %v783 = vadd.f32 0.0, %v782
        %v784 = vpop.f32.mrf.mxu0
        %v785 = vpop.f32.mrf.mxu0
        %v786 = vadd.f32 0.0, %v785
        %v787 = vpop.f32.mrf.mxu0
        %788 = vmatprep.mubr.bf16.mxu0 %v525
        %789 = vmatmul.mubr.bf16.gmra.mxu0 %v524
        %v790 = vpop.f32.mrf.mxu0
        %v791 = vadd.f32 0.0, %v790
        %v792 = vpop.f32.mrf.mxu0
        %v793 = vpop.f32.mrf.mxu0
        %v794 = vadd.f32 0.0, %v793
        %v795 = vpop.f32.mrf.mxu0
        %796 = vmatprep.mubr.bf16.mxu0 %v527
        %797 = vmatmul.mubr.bf16.gmra.mxu0 %v526
        %v798 = vpop.f32.mrf.mxu0
        %v799 = vadd.f32 0.0, %v798
        %v800 = vpop.f32.mrf.mxu0
        %v801 = vpop.f32.mrf.mxu0
        %v802 = vadd.f32 0.0, %v801
        %v803 = vpop.f32.mrf.mxu0
        %804 = vmatprep.mubr.bf16.mxu0 %v529
        %805 = vmatmul.mubr.bf16.gmra.mxu0 %v528
        %v806 = vpop.f32.mrf.mxu0
        %v807 = vadd.f32 0.0, %v806
        %v808 = vpop.f32.mrf.mxu0
        %v809 = vpop.f32.mrf.mxu0
        %v810 = vadd.f32 0.0, %v809
        %v811 = vpop.f32.mrf.mxu0
        %812 = vmatprep.mubr.bf16.mxu0 %v531
        %813 = vmatmul.mubr.bf16.gmra.mxu0 %v530
        %v814 = vpop.f32.mrf.mxu0
        %v815 = vadd.f32 0.0, %v814
        %v816 = vpop.f32.mrf.mxu0
        %v817 = vpop.f32.mrf.mxu0
        %v818 = vadd.f32 0.0, %v817
        %v819 = vpop.f32.mrf.mxu0
        %820 = vdwg.mxu0
        %v821 = vadd.f32 %v308, %v695
        %v822 = vadd.f32 %v309, %v698
        %v823 = vadd.f32 %v310, %v703
        %v824 = vadd.f32 %v311, %v706
        %v825 = vadd.f32 %v312, %v711
        %v826 = vadd.f32 %v313, %v714
        %v827 = vadd.f32 %v314, %v719
        %v828 = vadd.f32 %v315, %v722
        %v829 = vadd.f32 %v316, %v727
        %v830 = vadd.f32 %v317, %v730
        %v831 = vadd.f32 %v318, %v735
        %v832 = vadd.f32 %v319, %v738
        %v833 = vadd.f32 %v320, %v743
        %v834 = vadd.f32 %v321, %v746
        %v835 = vadd.f32 %v322, %v751
        %v836 = vadd.f32 %v323, %v754
        %v837 = vadd.f32 %v324, %v759
        %v838 = vadd.f32 %v325, %v762
        %v839 = vadd.f32 %v326, %v767
        %v840 = vadd.f32 %v327, %v770
        %v841 = vadd.f32 %v328, %v775
        %v842 = vadd.f32 %v329, %v778
        %v843 = vadd.f32 %v330, %v783
        %v844 = vadd.f32 %v331, %v786
        %v845 = vadd.f32 %v332, %v791
        %v846 = vadd.f32 %v333, %v794
        %v847 = vadd.f32 %v334, %v799
        %v848 = vadd.f32 %v335, %v802
        %v849 = vadd.f32 %v336, %v807
        %v850 = vadd.f32 %v337, %v810
        %v851 = vadd.f32 %v338, %v815
        %v852 = vadd.f32 %v339, %v818
        %vm853 = vcmask 523264
        %854 = vst.msk [vmem:[#allocation2] sm:$0xff] %vm853, %v821
        %855 = vst.msk [vmem:[#allocation2 + $0x8] sm:$0xff] %vm853, %v822
        %856 = vst.msk [vmem:[#allocation2 + $0x10] sm:$0xff] %vm853, %v823
        %857 = vst.msk [vmem:[#allocation2 + $0x18] sm:$0xff] %vm853, %v824
        %858 = vst.msk [vmem:[#allocation2 + $0x20] sm:$0xff] %vm853, %v825
        %859 = vst.msk [vmem:[#allocation2 + $0x28] sm:$0xff] %vm853, %v826
        %860 = vst.msk [vmem:[#allocation2 + $0x30] sm:$0xff] %vm853, %v827
        %861 = vst.msk [vmem:[#allocation2 + $0x38] sm:$0xff] %vm853, %v828
        %862 = vst.msk [vmem:[#allocation2 + $0x40] sm:$0xff] %vm853, %v829
        %863 = vst.msk [vmem:[#allocation2 + $0x48] sm:$0xff] %vm853, %v830
        %864 = vst.msk [vmem:[#allocation2 + $0x50] sm:$0xff] %vm853, %v831
        %865 = vst.msk [vmem:[#allocation2 + $0x58] sm:$0xff] %vm853, %v832
        %866 = vst.msk [vmem:[#allocation2 + $0x60] sm:$0xff] %vm853, %v833
        %867 = vst.msk [vmem:[#allocation2 + $0x68] sm:$0xff] %vm853, %v834
        %868 = vst.msk [vmem:[#allocation2 + $0x70] sm:$0xff] %vm853, %v835
        %869 = vst.msk [vmem:[#allocation2 + $0x78] sm:$0xff] %vm853, %v836
        %870 = vst.msk [vmem:[#allocation2 + $0x80] sm:$0xff] %vm853, %v837
        %871 = vst.msk [vmem:[#allocation2 + $0x88] sm:$0xff] %vm853, %v838
        %872 = vst.msk [vmem:[#allocation2 + $0x90] sm:$0xff] %vm853, %v839
        %873 = vst.msk [vmem:[#allocation2 + $0x98] sm:$0xff] %vm853, %v840
        %874 = vst.msk [vmem:[#allocation2 + $0xa0] sm:$0xff] %vm853, %v841
        %875 = vst.msk [vmem:[#allocation2 + $0xa8] sm:$0xff] %vm853, %v842
        %876 = vst.msk [vmem:[#allocation2 + $0xb0] sm:$0xff] %vm853, %v843
        %877 = vst.msk [vmem:[#allocation2 + $0xb8] sm:$0xff] %vm853, %v844
        %878 = vst.msk [vmem:[#allocation2 + $0xc0] sm:$0xff] %vm853, %v845
        %879 = vst.msk [vmem:[#allocation2 + $0xc8] sm:$0xff] %vm853, %v846
        %880 = vst.msk [vmem:[#allocation2 + $0xd0] sm:$0xff] %vm853, %v847
        %881 = vst.msk [vmem:[#allocation2 + $0xd8] sm:$0xff] %vm853, %v848
        %882 = vst.msk [vmem:[#allocation2 + $0xe0] sm:$0xff] %vm853, %v849
        %883 = vst.msk [vmem:[#allocation2 + $0xe8] sm:$0xff] %vm853, %v850
        %884 = vst.msk [vmem:[#allocation2 + $0xf0] sm:$0xff] %vm853, %v851
        %885 = vst.msk [vmem:[#allocation2 + $0xf8] sm:$0xff] %vm853, %v852
        // Predicated region
        $region41: #{tpu_custom_call.1} parent=31 // pred_check
          %p886 = pneg %p271
        $region42: #{tpu_custom_call.1} parent=31 // pred_check_branch
          %888 = sbr.rel (%p886) target = $region44
        $region43: #{tpu_custom_call.1} parent=31 // pred_region
          %v889 = vld [vmem:[#allocation2] sm:$0xff]
          %v890 = vld [vmem:[#allocation2 + $0x8] sm:$0xff]
          %v891 = vld [vmem:[#allocation2 + $0x10] sm:$0xff]
          %v892 = vld [vmem:[#allocation2 + $0x18] sm:$0xff]
          %v893 = vld [vmem:[#allocation2 + $0x20] sm:$0xff]
          %v894 = vld [vmem:[#allocation2 + $0x28] sm:$0xff]
          %v895 = vld [vmem:[#allocation2 + $0x30] sm:$0xff]
          %v896 = vld [vmem:[#allocation2 + $0x38] sm:$0xff]
          %v897 = vld [vmem:[#allocation2 + $0x40] sm:$0xff]
          %v898 = vld [vmem:[#allocation2 + $0x48] sm:$0xff]
          %v899 = vld [vmem:[#allocation2 + $0x50] sm:$0xff]
          %v900 = vld [vmem:[#allocation2 + $0x58] sm:$0xff]
          %v901 = vld [vmem:[#allocation2 + $0x60] sm:$0xff]
          %v902 = vld [vmem:[#allocation2 + $0x68] sm:$0xff]
          %v903 = vld [vmem:[#allocation2 + $0x70] sm:$0xff]
          %v904 = vld [vmem:[#allocation2 + $0x78] sm:$0xff]
          %v905 = vld [vmem:[#allocation2 + $0x80] sm:$0xff]
          %v906 = vld [vmem:[#allocation2 + $0x88] sm:$0xff]
          %v907 = vld [vmem:[#allocation2 + $0x90] sm:$0xff]
          %v908 = vld [vmem:[#allocation2 + $0x98] sm:$0xff]
          %v909 = vld [vmem:[#allocation2 + $0xa0] sm:$0xff]
          %v910 = vld [vmem:[#allocation2 + $0xa8] sm:$0xff]
          %v911 = vld [vmem:[#allocation2 + $0xb0] sm:$0xff]
          %v912 = vld [vmem:[#allocation2 + $0xb8] sm:$0xff]
          %v913 = vld [vmem:[#allocation2 + $0xc0] sm:$0xff]
          %v914 = vld [vmem:[#allocation2 + $0xc8] sm:$0xff]
          %v915 = vld [vmem:[#allocation2 + $0xd0] sm:$0xff]
          %v916 = vld [vmem:[#allocation2 + $0xd8] sm:$0xff]
          %v917 = vld [vmem:[#allocation2 + $0xe0] sm:$0xff]
          %v918 = vld [vmem:[#allocation2 + $0xe8] sm:$0xff]
          %v919 = vld [vmem:[#allocation2 + $0xf0] sm:$0xff]
          %v920 = vld [vmem:[#allocation2 + $0xf8] sm:$0xff]
          %v921 = vld [vmem:[%s260] sm:$0x1]
          %v923 = vlaneseq
          %v924 = vshrl.u32 %v923, 7
          %v925 = vsub.s32 0, %v924
          %v926 = vrot.slane %v921, %v925
          %v928 = vadd.f32 %v889, %v926
          %v929 = vadd.f32 %v890, %v926
          %v930 = vadd.f32 %v891, %v926
          %v931 = vadd.f32 %v892, %v926
          %v932 = vadd.f32 %v893, %v926
          %v933 = vadd.f32 %v894, %v926
          %v934 = vadd.f32 %v895, %v926
          %v935 = vadd.f32 %v896, %v926
          %v936 = vadd.f32 %v897, %v926
          %v937 = vadd.f32 %v898, %v926
          %v938 = vadd.f32 %v899, %v926
          %v939 = vadd.f32 %v900, %v926
          %v940 = vadd.f32 %v901, %v926
          %v941 = vadd.f32 %v902, %v926
          %v942 = vadd.f32 %v903, %v926
          %v943 = vadd.f32 %v904, %v926
          %v944 = vadd.f32 %v905, %v926
          %v945 = vadd.f32 %v906, %v926
          %v946 = vadd.f32 %v907, %v926
          %v947 = vadd.f32 %v908, %v926
          %v948 = vadd.f32 %v909, %v926
          %v949 = vadd.f32 %v910, %v926
          %v950 = vadd.f32 %v911, %v926
          %v951 = vadd.f32 %v912, %v926
          %v952 = vadd.f32 %v913, %v926
          %v953 = vadd.f32 %v914, %v926
          %v954 = vadd.f32 %v915, %v926
          %v955 = vadd.f32 %v916, %v926
          %v956 = vadd.f32 %v917, %v926
          %v957 = vadd.f32 %v918, %v926
          %v958 = vadd.f32 %v919, %v926
          %v959 = vadd.f32 %v920, %v926
          %v960 = vmax.f32 %v928, 0.0
          %v961 = vmax.f32 %v929, 0.0
          %v962 = vmax.f32 %v930, 0.0
          %v963 = vmax.f32 %v931, 0.0
          %v964 = vmax.f32 %v932, 0.0
          %v965 = vmax.f32 %v933, 0.0
          %v966 = vmax.f32 %v934, 0.0
          %v967 = vmax.f32 %v935, 0.0
          %v968 = vmax.f32 %v936, 0.0
          %v969 = vmax.f32 %v937, 0.0
          %v970 = vmax.f32 %v938, 0.0
          %v971 = vmax.f32 %v939, 0.0
          %v972 = vmax.f32 %v940, 0.0
          %v973 = vmax.f32 %v941, 0.0
          %v974 = vmax.f32 %v942, 0.0
          %v975 = vmax.f32 %v943, 0.0
          %v976 = vmax.f32 %v944, 0.0
          %v977 = vmax.f32 %v945, 0.0
          %v978 = vmax.f32 %v946, 0.0
          %v979 = vmax.f32 %v947, 0.0
          %v980 = vmax.f32 %v948, 0.0
          %v981 = vmax.f32 %v949, 0.0
          %v982 = vmax.f32 %v950, 0.0
          %v983 = vmax.f32 %v951, 0.0
          %v984 = vmax.f32 %v952, 0.0
          %v985 = vmax.f32 %v953, 0.0
          %v986 = vmax.f32 %v954, 0.0
          %v987 = vmax.f32 %v955, 0.0
          %v988 = vmax.f32 %v956, 0.0
          %v989 = vmax.f32 %v957, 0.0
          %v990 = vmax.f32 %v958, 0.0
          %v991 = vmax.f32 %v959, 0.0
          %v992 = vpack.c.bf16 %v961, %v960
          %v993 = vpack.c.bf16 %v963, %v962
          %v994 = vpack.c.bf16 %v965, %v964
          %v995 = vpack.c.bf16 %v967, %v966
          %v996 = vpack.c.bf16 %v969, %v968
          %v997 = vpack.c.bf16 %v971, %v970
          %v998 = vpack.c.bf16 %v973, %v972
          %v999 = vpack.c.bf16 %v975, %v974
          %v1000 = vpack.c.bf16 %v977, %v976
          %v1001 = vpack.c.bf16 %v979, %v978
          %v1002 = vpack.c.bf16 %v981, %v980
          %v1003 = vpack.c.bf16 %v983, %v982
          %v1004 = vpack.c.bf16 %v985, %v984
          %v1005 = vpack.c.bf16 %v987, %v986
          %v1006 = vpack.c.bf16 %v989, %v988
          %v1007 = vpack.c.bf16 %v991, %v990
          %v1024 = vunpack.c.l.b16 %v992
          %v1025 = vunpack.c.h.b16 %v992
          %v1026 = vunpack.c.l.b16 %v993
          %v1027 = vunpack.c.h.b16 %v993
          %v1028 = vunpack.c.l.b16 %v994
          %v1029 = vunpack.c.h.b16 %v994
          %v1030 = vunpack.c.l.b16 %v995
          %v1031 = vunpack.c.h.b16 %v995
          %v1032 = vunpack.c.l.b16 %v996
          %v1033 = vunpack.c.h.b16 %v996
          %v1034 = vunpack.c.l.b16 %v997
          %v1035 = vunpack.c.h.b16 %v997
          %v1036 = vunpack.c.l.b16 %v998
          %v1037 = vunpack.c.h.b16 %v998
          %v1038 = vunpack.c.l.b16 %v999
          %v1039 = vunpack.c.h.b16 %v999
          %v1040 = vunpack.c.l.b16 %v1000
          %v1041 = vunpack.c.h.b16 %v1000
          %v1042 = vunpack.c.l.b16 %v1001
          %v1043 = vunpack.c.h.b16 %v1001
          %v1044 = vunpack.c.l.b16 %v1002
          %v1045 = vunpack.c.h.b16 %v1002
          %v1046 = vunpack.c.l.b16 %v1003
          %v1047 = vunpack.c.h.b16 %v1003
          %v1048 = vunpack.c.l.b16 %v1004
          %v1049 = vunpack.c.h.b16 %v1004
          %v1050 = vunpack.c.l.b16 %v1005
          %v1051 = vunpack.c.h.b16 %v1005
          %v1052 = vunpack.c.l.b16 %v1006
          %v1053 = vunpack.c.h.b16 %v1006
          %v1054 = vunpack.c.l.b16 %v1007
          %v1055 = vunpack.c.h.b16 %v1007
          %v1056 = vpack.c.b16 %v1024, %v1024
          %v1057 = vpack.c.b16 %v1025, %v1025
          %v1058 = vpack.c.b16 %v1026, %v1026
          %v1059 = vpack.c.b16 %v1027, %v1027
          %v1060 = vpack.c.b16 %v1028, %v1028
          %v1061 = vpack.c.b16 %v1029, %v1029
          %v1062 = vpack.c.b16 %v1030, %v1030
          %v1063 = vpack.c.b16 %v1031, %v1031
          %v1064 = vpack.c.b16 %v1032, %v1032
          %v1065 = vpack.c.b16 %v1033, %v1033
          %v1066 = vpack.c.b16 %v1034, %v1034
          %v1067 = vpack.c.b16 %v1035, %v1035
          %v1068 = vpack.c.b16 %v1036, %v1036
          %v1069 = vpack.c.b16 %v1037, %v1037
          %v1070 = vpack.c.b16 %v1038, %v1038
          %v1071 = vpack.c.b16 %v1039, %v1039
          %v1072 = vpack.c.b16 %v1040, %v1040
          %v1073 = vpack.c.b16 %v1041, %v1041
          %v1074 = vpack.c.b16 %v1042, %v1042
          %v1075 = vpack.c.b16 %v1043, %v1043
          %v1076 = vpack.c.b16 %v1044, %v1044
          %v1077 = vpack.c.b16 %v1045, %v1045
          %v1078 = vpack.c.b16 %v1046, %v1046
          %v1079 = vpack.c.b16 %v1047, %v1047
          %v1080 = vpack.c.b16 %v1048, %v1048
          %v1081 = vpack.c.b16 %v1049, %v1049
          %v1082 = vpack.c.b16 %v1050, %v1050
          %v1083 = vpack.c.b16 %v1051, %v1051
          %v1084 = vpack.c.b16 %v1052, %v1052
          %v1085 = vpack.c.b16 %v1053, %v1053
          %v1086 = vpack.c.b16 %v1054, %v1054
          %v1087 = vpack.c.b16 %v1055, %v1055
          %vm1120 = vcmask 519168
          %1121 = vst.msk [vmem:[%s268] sm:$0xf] %vm1120, %v1056
          %1122 = vst.msk [vmem:[%s268 + $0x4] sm:$0xf] %vm1120, %v1057
          %1123 = vst.msk [vmem:[%s268 + $0x8] sm:$0xf] %vm1120, %v1058
          %1124 = vst.msk [vmem:[%s268 + $0xc] sm:$0xf] %vm1120, %v1059
          %1125 = vst.msk [vmem:[%s268 + $0x10] sm:$0xf] %vm1120, %v1060
          %1126 = vst.msk [vmem:[%s268 + $0x14] sm:$0xf] %vm1120, %v1061
          %1127 = vst.msk [vmem:[%s268 + $0x18] sm:$0xf] %vm1120, %v1062
          %1128 = vst.msk [vmem:[%s268 + $0x1c] sm:$0xf] %vm1120, %v1063
          %1129 = vst.msk [vmem:[%s268 + $0x20] sm:$0xf] %vm1120, %v1064
          %1130 = vst.msk [vmem:[%s268 + $0x24] sm:$0xf] %vm1120, %v1065
          %1131 = vst.msk [vmem:[%s268 + $0x28] sm:$0xf] %vm1120, %v1066
          %1132 = vst.msk [vmem:[%s268 + $0x2c] sm:$0xf] %vm1120, %v1067
          %1133 = vst.msk [vmem:[%s268 + $0x30] sm:$0xf] %vm1120, %v1068
          %1134 = vst.msk [vmem:[%s268 + $0x34] sm:$0xf] %vm1120, %v1069
          %1135 = vst.msk [vmem:[%s268 + $0x38] sm:$0xf] %vm1120, %v1070
          %1136 = vst.msk [vmem:[%s268 + $0x3c] sm:$0xf] %vm1120, %v1071
          %1137 = vst.msk [vmem:[%s268 + $0x40] sm:$0xf] %vm1120, %v1072
          %1138 = vst.msk [vmem:[%s268 + $0x44] sm:$0xf] %vm1120, %v1073
          %1139 = vst.msk [vmem:[%s268 + $0x48] sm:$0xf] %vm1120, %v1074
          %1140 = vst.msk [vmem:[%s268 + $0x4c] sm:$0xf] %vm1120, %v1075
          %1141 = vst.msk [vmem:[%s268 + $0x50] sm:$0xf] %vm1120, %v1076
          %1142 = vst.msk [vmem:[%s268 + $0x54] sm:$0xf] %vm1120, %v1077
          %1143 = vst.msk [vmem:[%s268 + $0x58] sm:$0xf] %vm1120, %v1078
          %1144 = vst.msk [vmem:[%s268 + $0x5c] sm:$0xf] %vm1120, %v1079
          %1145 = vst.msk [vmem:[%s268 + $0x60] sm:$0xf] %vm1120, %v1080
          %1146 = vst.msk [vmem:[%s268 + $0x64] sm:$0xf] %vm1120, %v1081
          %1147 = vst.msk [vmem:[%s268 + $0x68] sm:$0xf] %vm1120, %v1082
          %1148 = vst.msk [vmem:[%s268 + $0x6c] sm:$0xf] %vm1120, %v1083
          %1149 = vst.msk [vmem:[%s268 + $0x70] sm:$0xf] %vm1120, %v1084
          %1150 = vst.msk [vmem:[%s268 + $0x74] sm:$0xf] %vm1120, %v1085
          %1151 = vst.msk [vmem:[%s268 + $0x78] sm:$0xf] %vm1120, %v1086
          %1152 = vst.msk [vmem:[%s268 + $0x7c] sm:$0xf] %vm1120, %v1087
        $region44: #{tpu_custom_call.1} parent=31 // pred_fallthru
          _
        %s1153 = smul.u32 32, %s22
        %p1154 = scmp.lt.s32.totalorder %s1153, 63
        %s1155 = scalar_select %p1154, %s1153, 63
        %p1156 = scmp.lt.s32.totalorder %s23, 0
        %s1157 = scalar_select %p1156, %s23, 0
        %s1158 = sadd.s32 %s1157, %s1155
        %s1159 = smul.addr %s1158, 4
        %s1160 = scalar_lea.vmem %s3, %s1159
        // Predicated region
        $region45: #{tpu_custom_call.1} parent=31 // pred_check
          %p1161 = pneg %p138
        $region46: #{tpu_custom_call.1} parent=31 // pred_check_branch
          %1163 = sbr.rel (%p1161) target = $region48
        $region47: #{tpu_custom_call.1} parent=31 // pred_region
          %s1164 = smul.u32 32, %s22
        $region48: #{tpu_custom_call.1} parent=31 // pred_fallthru
          _
      $region32: #{tpu_custom_call.1} parent=5 // pred_fallthru
        _
      %p1165 = scmp.le.s32.totalorder 2, %s12
      // Predicated region
      $region49: #{tpu_custom_call.1} parent=5 // pred_check
        %p1166 = pneg %p1165
      $region50: #{tpu_custom_call.1} parent=5 // pred_check_branch
        %1168 = sbr.rel (%p1166) target = $region52
      $region51: #{tpu_custom_call.1} parent=5 // pred_region
        %s1169 = ssub.s32 %s12, 2
        // Predicated region
        $region53: #{tpu_custom_call.1} parent=51 // pred_check
          %p1170 = pneg %p144
        $region54: #{tpu_custom_call.1} parent=51 // pred_check_branch
          %1172 = sbr.rel (%p1170) target = $region56
        $region55: #{tpu_custom_call.1} parent=51 // pred_region
          %s1173 = smul.u32 32, %s25
          %p1174 = scmp.lt.s32.totalorder %s1173, 63
          %s1175 = scalar_select %p1174, %s1173, 63
          %p1176 = scmp.lt.s32.totalorder %s26, 0
          %s1177 = scalar_select %p1176, %s26, 0
          %s1178 = sadd.s32 %s1177, %s1175
          %s1179 = smul.addr %s1178, 4
          %s1180 = scalar_lea.vmem %s3, %s1179
        $region56: #{tpu_custom_call.1} parent=51 // pred_fallthru
          _
      $region52: #{tpu_custom_call.1} parent=5 // pred_fallthru
        _
    $region6: #{tpu_custom_call.1} parent=1 // loop_footer
      %s16 = sadd.s32 1, %s12
    $region7: #{tpu_custom_call.1} parent=1 // loop_footer_branch
      %11 = sbr.rel target = $region3
    $region8: #{tpu_custom_call.1} parent=1 // loop_exit
      _
    %1181 = vsyncpa [#allocation4], 1
    %s1182 = scalar_lea.sflag [#allocation4], 1
    %1183 = vsyncpa %s1182, 1

</llo_original>
